<compile_context>
chip_gen: v7x
topology: tpu7x:2x2x1
jax: 0.10.0
libtpu: 0.0.40
codegen_flags: <defaults>
</compile_context>

<pallas_src>
import functools

import jax
import jax.numpy as jnp
from jax.experimental import pallas as pl
from jax.experimental.pallas import tpu as pltpu


def _round_up(x, m):
    return (x + m - 1) // m * m


def _is_megacore():
    """True only for chips whose 2 TensorCores split a 'parallel' grid axis."""
    try:
        kind = jax.devices()[0].device_kind.lower()
    except Exception:
        return True  # unknown: keep the split (costs ~0.35us on 1-TC chips)
    single_core = any(t in kind for t in ("v5e", "v6e", "lite"))
    return not single_core


def _pick_tile(E, requested, bytes_x, bytes_out, f_pad, megacore):
    """Large tiles amortize the ~0.35us/step pipeline overhead; clamp to VMEM."""
    # Double-buffered per-row VMEM cost (x tile is lane-padded to 128 in VMEM).
    per_row = 2 * 128 * bytes_x + 2 * f_pad * bytes_out
    budget = 20 * 1024 * 1024                       # fits every TPU generation
    vmem_rows = max(8, (budget // per_row) // 8 * 8)
    t = max(8, min(int(requested), 8192, vmem_rows))
    t = _round_up(t, 8)
    t = min(t, _round_up(E, 8))                     # never larger than the data
    if megacore and E > 8 and pl.cdiv(E, t) < 2:    # give the 2nd TC work
        t = min(t, max(8, _round_up(pl.cdiv(E, 2), 8)))
    return t


def _pack_params(params, d_in_pad, f_pad, w_dtype):
    """Pack all weights into one slab per layer at 8-aligned row offsets.

    Every layer is zero-padded in both K (rows) and N (cols) so the kernel can
    slice (8,128)-aligned, full-lane-width views and run every matmul at
    128-lane width; the zero rows/cols contribute nothing to the result.
    """
    (w1, b1), (w2, b2), (w3, b3), (w4, b4) = params
    rows = d_in_pad + 3 * 128
    cols = f_pad

    w_pack = jnp.zeros((rows, cols), jnp.float32)
    w_pack = w_pack.at[0:w1.shape[0], 0:16].set(w1.astype(jnp.float32))
    r = d_in_pad
    w_pack = w_pack.at[r:r + 16, 0:32].set(w2.astype(jnp.float32))
    r += 128
    w_pack = w_pack.at[r:r + 32, 0:64].set(w3.astype(jnp.float32))
    r += 128
    w_pack = w_pack.at[r:r + 64, 0:w4.shape[1]].set(w4.astype(jnp.float32))
    w_pack = w_pack.astype(w_dtype)                 # bf16 in the fast path

    b_pack = jnp.zeros((4, cols), jnp.float32)      # biases / accumulation: f32
    b_pack = b_pack.at[0, 0:16].set(b1.astype(jnp.float32))
    b_pack = b_pack.at[1, 0:32].set(b2.astype(jnp.float32))
    b_pack = b_pack.at[2, 0:64].set(b3.astype(jnp.float32))
    b_pack = b_pack.at[3, 0:b4.shape[0]].set(b4.astype(jnp.float32))
    return w_pack, b_pack


def _make_kernel(d_in_pad, f_pad, mxu_dtype):
    """Fused 4-layer MLP; static pack row offsets baked in."""
    r1, r2, r3, r4 = 0, d_in_pad, d_in_pad + 128, d_in_pad + 256

    def kernel(x_ref, w_ref, b_ref, o_ref):
        def mm(a, w):
            return jnp.dot(a, w, preferred_element_type=jnp.float32)

        x = x_ref[...]                          # (tile, d_in_pad), mxu dtype
        b = b_ref[...]                          # (4, f_pad) f32, loaded once
        w1 = w_ref[r1:r1 + d_in_pad, 0:128]     # 8-aligned full-lane views
        w2 = w_ref[r2:r2 + 128, 0:128]
        w3 = w_ref[r3:r3 + 128, 0:128]
        w4 = w_ref[r4:r4 + 128, :]

        h = jnp.maximum(mm(x, w1) + b[0:1, 0:128], 0.0)
        h = jnp.maximum(mm(h.astype(mxu_dtype), w2) + b[1:2, 0:128], 0.0)
        h = jnp.maximum(mm(h.astype(mxu_dtype), w3) + b[2:3, 0:128], 0.0)
        out = mm(h.astype(mxu_dtype), w4) + b[3:4, :]
        o_ref[...] = out.astype(o_ref.dtype)    # lane-dense (tile, f_pad) store

    return kernel


@functools.partial(jax.jit, static_argnames=("tile_e", "use_bf16"))
def edge_encoder_forward(edge_attr, params, *, tile_e=2048, use_bf16=True):
    """edge_mlp(edge_attr) via one fused Pallas kernel, tiling over edges."""
    (_, _), (_, _), (_, _), (w4, _) = params
    E, d_in = edge_attr.shape
    F = w4.shape[1]
    d_in_pad = _round_up(d_in, 8)
    f_pad = _round_up(F, 128)                   # lane-dense output slab

    mxu_dtype = jnp.bfloat16 if use_bf16 else jnp.float32
    out_dtype = edge_attr.dtype
    bytes_x = jnp.dtype(mxu_dtype).itemsize
    bytes_out = jnp.dtype(out_dtype).itemsize

    tile = _pick_tile(E, tile_e, bytes_x, bytes_out, f_pad, _is_megacore())
    grid_e = pl.cdiv(E, tile)
    E_pad = grid_e * tile

    # Pre-cast + pad once in the wrapper (no per-grid-step casts in-kernel).
    x = edge_attr.astype(mxu_dtype)
    if E_pad != E or d_in_pad != d_in:
        x = jnp.pad(x, ((0, E_pad - E), (0, d_in_pad - d_in)))
    w_pack, b_pack = _pack_params(params, d_in_pad, f_pad, mxu_dtype)

    flops = 2 * E_pad * (d_in_pad * 128 + 128 * 128 + 128 * 128 + 128 * f_pad)
    bytes_accessed = (E_pad * d_in_pad * bytes_x + E_pad * f_pad * bytes_out
                      + w_pack.size * bytes_x + b_pack.size * 4)

    out = pl.pallas_call(
        _make_kernel(d_in_pad, f_pad, mxu_dtype),
        out_shape=jax.ShapeDtypeStruct((E_pad, f_pad), out_dtype),
        grid_spec=pltpu.PrefetchScalarGridSpec(
            num_scalar_prefetch=0,
            grid=(grid_e,),
            in_specs=[
                pl.BlockSpec((tile, d_in_pad), lambda i: (i, 0)),  # edge tile
                # Grid-invariant packs: constant index_map => resident.
                pl.BlockSpec(w_pack.shape, lambda i: (0, 0)),
                pl.BlockSpec(b_pack.shape, lambda i: (0, 0)),
            ],
            out_specs=pl.BlockSpec((tile, f_pad), lambda i: (i, 0)),
        ),
        compiler_params=pltpu.CompilerParams(
            dimension_semantics=("parallel",),
            vmem_limit_bytes=32 * 1024 * 1024),
        cost_estimate=pl.CostEstimate(flops=int(flops), transcendentals=0,
                                      bytes_accessed=int(bytes_accessed)),
    )(x, w_pack, b_pack)

    return out[:E, :F]


def init_params(key, input_dim, feature_dim):
    """PyTorch-style Linear init: U(-1/sqrt(fan_in), 1/sqrt(fan_in)); W stored [in, out]."""
    dims = [input_dim, 16, 32, 64, feature_dim]
    params = []
    for d_in, d_out in zip(dims[:-1], dims[1:]):
        key, kw, kb = jax.random.split(key, 3)
        bound = 1.0 / (d_in ** 0.5)
        w = jax.random.uniform(kw, (d_in, d_out), jnp.float32, -bound, bound)
        b = jax.random.uniform(kb, (d_out,), jnp.float32, -bound, bound)
        params.append((w, b))
    return params


def edge_encoder_ref(edge_attr, params):
    h = edge_attr.astype(jnp.float32)
    for li, (w, b) in enumerate(params):
        h = h @ w + b
        if li < len(params) - 1:
            h = jnp.maximum(h, 0.0)
    return h


if __name__ == "__main__":
    key = jax.random.PRNGKey(0)
    input_dim, feature_dim = 4, 32
    n_nodes, n_edges, n_graphs, u_dim = 8, 300, 2, 8   # non-multiple edge count

    key, k_edge, k_u, k_src = jax.random.split(key, 4)
    edge_attr = jax.random.normal(k_edge, (n_edges, input_dim), jnp.float32)
    # Unused-by-forward inputs (interface parity with the nn.Module):
    src = jax.random.normal(k_src, (n_edges, 4), jnp.float32)
    dst = src
    u = jax.random.normal(k_u, (n_graphs, u_dim), jnp.float32)
    batch = jnp.zeros((n_nodes,), jnp.int32)

    params = init_params(jax.random.PRNGKey(42), input_dim, feature_dim)
    ref = edge_encoder_ref(edge_attr, params)

    # Production fast path: bf16 MXU inputs, f32 accumulation.
    out_bf16 = jax.block_until_ready(
        edge_encoder_forward(edge_attr, params, tile_e=2048, use_bf16=True))
    assert out_bf16.shape == (n_edges, feature_dim)
    assert out_bf16.dtype == edge_attr.dtype
    assert jnp.allclose(out_bf16, ref, atol=5e-2, rtol=5e-2), "bf16 mismatch vs reference"

    # Test-only exact-precision path (f32 MXU inputs) — strict check.
    out_f32 = jax.block_until_ready(
        edge_encoder_forward(edge_attr, params, tile_e=2048, use_bf16=False))
    assert out_f32.shape == (n_edges, feature_dim)
    assert jnp.allclose(out_f32, ref, atol=1e-5, rtol=1e-5), "f32 mismatch vs reference"

    print("KERNEL_OK")
</pallas_src>

<mosaic_0001>
module attributes {stable_mosaic.version = 11 : i64} {
  func.func @kernel(%arg0: i32, %arg1: memref<152x8xbf16, #tpu.memory_space<vmem>>, %arg2: memref<392x128xbf16, #tpu.memory_space<vmem>>, %arg3: memref<4x128xf32, #tpu.memory_space<vmem>>, %arg4: memref<152x128xf32, #tpu.memory_space<vmem>>) attributes {dimension_semantics = [#tpu.dimension_semantics<parallel>], iteration_bounds = array<i64: 2>, scalar_prefetch = 0 : i64, scratch_operands = 0 : i64, tpu.core_type = #tpu.core_type<tc>, window_params = [{transform_indices = @transform_0, window_bounds = array<i64: 152, 8>}, {pipeline_mode = #tpu.pipeline_mode<synchronous>, transform_indices = @transform_1, window_bounds = array<i64: 392, 128>}, {pipeline_mode = #tpu.pipeline_mode<synchronous>, transform_indices = @transform_2, window_bounds = array<i64: 4, 128>}, {transform_indices = @transform_3, window_bounds = array<i64: 152, 128>}]} {
    %c0 = arith.constant 0 : index
    %c0_0 = arith.constant 0 : index
    %0 = vector.load %arg1[%c0, %c0_0] : memref<152x8xbf16, #tpu.memory_space<vmem>>, vector<152x8xbf16>
    %c0_1 = arith.constant 0 : index
    %c0_2 = arith.constant 0 : index
    %1 = vector.load %arg3[%c0_1, %c0_2] : memref<4x128xf32, #tpu.memory_space<vmem>>, vector<4x128xf32>
    %c0_3 = arith.constant 0 : index
    %c0_4 = arith.constant 0 : index
    %2 = vector.load %arg2[%c0_3, %c0_4] : memref<392x128xbf16, #tpu.memory_space<vmem>>, vector<8x128xbf16>
    %c8 = arith.constant 8 : index
    %c0_5 = arith.constant 0 : index
    %3 = vector.load %arg2[%c8, %c0_5] : memref<392x128xbf16, #tpu.memory_space<vmem>>, vector<128x128xbf16>
    %c136 = arith.constant 136 : index
    %c0_6 = arith.constant 0 : index
    %4 = vector.load %arg2[%c136, %c0_6] : memref<392x128xbf16, #tpu.memory_space<vmem>>, vector<128x128xbf16>
    %c264 = arith.constant 264 : index
    %c0_7 = arith.constant 0 : index
    %5 = vector.load %arg2[%c264, %c0_7] : memref<392x128xbf16, #tpu.memory_space<vmem>>, vector<128x128xbf16>
    %cst = arith.constant dense<0.000000e+00> : vector<152x128xf32>
    %6 = tpu.matmul %0, %2, %cst {dimension_numbers = #tpu.dot_dimension_numbers<[1], [0], [0], [1], [0, 0, 1, 1], [], []>} : vector<152x8xbf16>, vector<8x128xbf16>, vector<152x128xf32> -> vector<152x128xf32>
    %7 = vector.extract_strided_slice %1 {offsets = [0, 0], sizes = [1, 128], strides = [1, 1]} : vector<4x128xf32> to vector<1x128xf32>
    %8 = vector.broadcast %7 : vector<1x128xf32> to vector<152x128xf32>
    %9 = arith.addf %6, %8 : vector<152x128xf32>
    %cst_8 = arith.constant 0.000000e+00 : f32
    %10 = vector.broadcast %cst_8 : f32 to vector<152x128xf32>
    %11 = arith.maximumf %9, %10 : vector<152x128xf32>
    %12 = arith.truncf %11 : vector<152x128xf32> to vector<152x128xbf16>
    %cst_9 = arith.constant dense<0.000000e+00> : vector<152x128xf32>
    %13 = tpu.matmul %12, %3, %cst_9 {dimension_numbers = #tpu.dot_dimension_numbers<[1], [0], [0], [1], [0, 0, 1, 1], [], []>} : vector<152x128xbf16>, vector<128x128xbf16>, vector<152x128xf32> -> vector<152x128xf32>
    %14 = vector.extract_strided_slice %1 {offsets = [1, 0], sizes = [1, 128], strides = [1, 1]} : vector<4x128xf32> to vector<1x128xf32>
    %15 = vector.broadcast %14 : vector<1x128xf32> to vector<152x128xf32>
    %16 = arith.addf %13, %15 : vector<152x128xf32>
    %cst_10 = arith.constant 0.000000e+00 : f32
    %17 = vector.broadcast %cst_10 : f32 to vector<152x128xf32>
    %18 = arith.maximumf %16, %17 : vector<152x128xf32>
    %19 = arith.truncf %18 : vector<152x128xf32> to vector<152x128xbf16>
    %cst_11 = arith.constant dense<0.000000e+00> : vector<152x128xf32>
    %20 = tpu.matmul %19, %4, %cst_11 {dimension_numbers = #tpu.dot_dimension_numbers<[1], [0], [0], [1], [0, 0, 1, 1], [], []>} : vector<152x128xbf16>, vector<128x128xbf16>, vector<152x128xf32> -> vector<152x128xf32>
    %21 = vector.extract_strided_slice %1 {offsets = [2, 0], sizes = [1, 128], strides = [1, 1]} : vector<4x128xf32> to vector<1x128xf32>
    %22 = vector.broadcast %21 : vector<1x128xf32> to vector<152x128xf32>
    %23 = arith.addf %20, %22 : vector<152x128xf32>
    %cst_12 = arith.constant 0.000000e+00 : f32
    %24 = vector.broadcast %cst_12 : f32 to vector<152x128xf32>
    %25 = arith.maximumf %23, %24 : vector<152x128xf32>
    %26 = arith.truncf %25 : vector<152x128xf32> to vector<152x128xbf16>
    %cst_13 = arith.constant dense<0.000000e+00> : vector<152x128xf32>
    %27 = tpu.matmul %26, %5, %cst_13 {dimension_numbers = #tpu.dot_dimension_numbers<[1], [0], [0], [1], [0, 0, 1, 1], [], []>} : vector<152x128xbf16>, vector<128x128xbf16>, vector<152x128xf32> -> vector<152x128xf32>
    %28 = vector.extract_strided_slice %1 {offsets = [3, 0], sizes = [1, 128], strides = [1, 1]} : vector<4x128xf32> to vector<1x128xf32>
    %29 = vector.broadcast %28 : vector<1x128xf32> to vector<152x128xf32>
    %30 = arith.addf %27, %29 : vector<152x128xf32>
    %c0_14 = arith.constant 0 : index
    %c0_15 = arith.constant 0 : index
    %31 = vector.load %arg4[%c0_14, %c0_15] : memref<152x128xf32, #tpu.memory_space<vmem>>, vector<152x128xf32>
    tpu.vector_store %arg4[%c0_14, %c0_15], %30 {strides = array<i32>} : memref<152x128xf32, #tpu.memory_space<vmem>>, vector<152x128xf32>,
    return
  }
  func.func @transform_0(%arg0: i32) -> (i32, i32) {
    %c0_i32 = arith.constant 0 : i32
    %c0_i32_0 = arith.constant 0 : i32
    return %arg0, %c0_i32 : i32, i32
  }
  func.func @transform_1(%arg0: i32) -> (i32, i32) {
    %c0_i32 = arith.constant 0 : i32
    %c0_i32_0 = arith.constant 0 : i32
    %c0_i32_1 = arith.constant 0 : i32
    return %c0_i32, %c0_i32_0 : i32, i32
  }
  func.func @transform_2(%arg0: i32) -> (i32, i32) {
    %c0_i32 = arith.constant 0 : i32
    %c0_i32_0 = arith.constant 0 : i32
    %c0_i32_1 = arith.constant 0 : i32
    return %c0_i32, %c0_i32_0 : i32, i32
  }
  func.func @transform_3(%arg0: i32) -> (i32, i32) {
    %c0_i32 = arith.constant 0 : i32
    %c0_i32_0 = arith.constant 0 : i32
    return %arg0, %c0_i32 : i32, i32
  }
}

</mosaic_0001>

<llo_original>
// kernel: edge_encoder_forward.1
$region0: #{edge_encoder_forward.1}
  #allocation0 [shape = 'u32[]', space=smem, size = 0x4, offset = 0x4, fixed_abs, tag = 'smem constant byte address 0x4 - core index']
  #allocation1 [shape = 'u32[144,128]{1,0:T(1,128)}', space=vmem, size = 0x12000, scoped, tag = 'internal scratch']
  %s0 = inlined_call_operand.vmem [shape: bf16[304,8], index: 0, kind: input, shape index: {}]
  %s1 = inlined_call_operand.vmem [shape: bf16[392,128], index: 1, kind: input, shape index: {}]
  %s2 = inlined_call_operand.vmem [shape: f32[4,128], index: 2, kind: input, shape index: {}]
  %s3 = inlined_call_operand.vmem [shape: f32[304,128], index: 3, kind: output, shape index: {}]
  %s4 = sld [smem:[#allocation0]]
  $region45: #{edge_encoder_forward.1} parent=0
    _
  %s6 = ssub.s32 1, %s4
  %s7 = scalar_select 0, %s6, %s4
  loop: start=0, step=1, limit=4
  $region2: #{edge_encoder_forward.1} parent=0 // loop_pre_header
    _
  $region3: #{edge_encoder_forward.1} parent=0 // loop_header
    %s9 = sphi 0, %s13
    %p10 = scmp.ge.s32.totalorder %s9, 4
    %s19 = sphi 0, %s21
    %s22 = sphi 0, %s19
    %s23 = sphi 0, %s22
    %s39 = sphi 0, %s23
    %s43 = sphi 0, %s43
    %s45 = sphi 0, %s43
    %s46 = sphi 0, %s45
    %s60 = sphi 0, %s46
    %s64 = sphi 0, %s64
    %s66 = sphi 0, %s64
    %s67 = sphi 0, %s66
    %s81 = sphi 0, %s67
    %s87 = sphi 0, %s89
    %s90 = sphi 0, %s87
    %s91 = sphi 0, %s90
    %s107 = sphi 0, %s91
  $region4: #{edge_encoder_forward.1} parent=0 // loop_header_branch
    %12 = sbr.rel (%p10) target = $region8
  $region5: #{edge_encoder_forward.1} parent=0 // loop_body
    %s14 = ssub.s32 %s9, 1
    %s15 = ssub.s32 %s9, 2
    %s16 = sadd.s32 %s9, 1
    %s17 = ssub.s32 %s9, %s16
    %p18 = scmp.eq.s32.totalorder %s17, 0
    %s20 = sadd.s32 %s19, 1
    %s21 = scalar_select %p18, %s19, %s20
    %p24 = pneg %p18
    %p25 = scmp.eq.s32.totalorder %s9, 1
    %p26 = por %p24, %p25
    %p27 = scmp.ne.s32.totalorder %s19, %s22
    %p28 = scmp.eq.s32.totalorder %s9, 0
    %p29 = por %p27, %p28
    %p30 = scmp.ne.s32.totalorder %s19, %s22
    %p31 = scmp.eq.s32.totalorder %s14, 1
    %p32 = por %p30, %p31
    %p33 = scmp.ne.s32.totalorder %s22, %s23
    %p34 = scmp.eq.s32.totalorder %s14, 0
    %p35 = por %p33, %p34
    %p36 = scmp.ne.s32.totalorder %s22, %s23
    %p37 = scmp.eq.s32.totalorder %s15, 1
    %p38 = por %p36, %p37
    %p40 = scmp.ne.s32.totalorder %s23, %s39
    %p41 = scmp.eq.s32.totalorder %s15, 0
    %p42 = por %p40, %p41
    %s44 = sadd.s32 %s43, 1
    %p47 = scmp.eq.s32.totalorder %s9, 1
    %p48 = scmp.ne.s32.totalorder %s43, %s45
    %p49 = scmp.eq.s32.totalorder %s9, 0
    %p50 = por %p48, %p49
    %p51 = scmp.ne.s32.totalorder %s43, %s45
    %p52 = scmp.eq.s32.totalorder %s14, 1
    %p53 = por %p51, %p52
    %p54 = scmp.ne.s32.totalorder %s45, %s46
    %p55 = scmp.eq.s32.totalorder %s14, 0
    %p56 = por %p54, %p55
    %p57 = scmp.ne.s32.totalorder %s45, %s46
    %p58 = scmp.eq.s32.totalorder %s15, 1
    %p59 = por %p57, %p58
    %p61 = scmp.ne.s32.totalorder %s46, %s60
    %p62 = scmp.eq.s32.totalorder %s15, 0
    %p63 = por %p61, %p62
    %s65 = sadd.s32 %s64, 1
    %p68 = scmp.eq.s32.totalorder %s9, 1
    %p69 = scmp.ne.s32.totalorder %s64, %s66
    %p70 = scmp.eq.s32.totalorder %s9, 0
    %p71 = por %p69, %p70
    %p72 = scmp.ne.s32.totalorder %s64, %s66
    %p73 = scmp.eq.s32.totalorder %s14, 1
    %p74 = por %p72, %p73
    %p75 = scmp.ne.s32.totalorder %s66, %s67
    %p76 = scmp.eq.s32.totalorder %s14, 0
    %p77 = por %p75, %p76
    %p78 = scmp.ne.s32.totalorder %s66, %s67
    %p79 = scmp.eq.s32.totalorder %s15, 1
    %p80 = por %p78, %p79
    %p82 = scmp.ne.s32.totalorder %s67, %s81
    %p83 = scmp.eq.s32.totalorder %s15, 0
    %p84 = por %p82, %p83
    %s85 = ssub.s32 %s9, %s16
    %p86 = scmp.eq.s32.totalorder %s85, 0
    %s88 = sadd.s32 %s87, 1
    %s89 = scalar_select %p86, %s87, %s88
    %p92 = pneg %p86
    %p93 = scmp.eq.s32.totalorder %s9, 1
    %p94 = por %p92, %p93
    %p95 = scmp.ne.s32.totalorder %s87, %s90
    %p96 = scmp.eq.s32.totalorder %s9, 0
    %p97 = por %p95, %p96
    %p98 = scmp.ne.s32.totalorder %s87, %s90
    %p99 = scmp.eq.s32.totalorder %s14, 1
    %p100 = por %p98, %p99
    %p101 = scmp.ne.s32.totalorder %s90, %s91
    %p102 = scmp.eq.s32.totalorder %s14, 0
    %p103 = por %p101, %p102
    %p104 = scmp.ne.s32.totalorder %s90, %s91
    %p105 = scmp.eq.s32.totalorder %s15, 1
    %p106 = por %p104, %p105
    %p108 = scmp.ne.s32.totalorder %s91, %s107
    %p109 = scmp.eq.s32.totalorder %s15, 0
    %p110 = por %p108, %p109
    %p111 = scmp.le.s32.totalorder 1, %s9
    %p112 = scmp.lt.s32.totalorder %s9, 3
    %p113 = pnand %p111, %p112
    %p114 = pneg %p113
    // Predicated region
    $region9: #{edge_encoder_forward.1} parent=5 // pred_check
      _
    $region10: #{edge_encoder_forward.1} parent=5 // pred_check_branch
      %116 = sbr.rel (%p113) target = $region12
    $region11: #{edge_encoder_forward.1} parent=5 // pred_region
      %s117 = ssub.s32 %s9, 1
      // Predicated region
      $region13: #{edge_encoder_forward.1} parent=11 // pred_check
        %p118 = pneg %p56
      $region14: #{edge_encoder_forward.1} parent=11 // pred_check_branch
        %120 = sbr.rel (%p118) target = $region16
      $region15: #{edge_encoder_forward.1} parent=11 // pred_region
        _
      $region16: #{edge_encoder_forward.1} parent=11 // pred_fallthru
        _
      // Predicated region
      $region17: #{edge_encoder_forward.1} parent=11 // pred_check
        %p121 = pneg %p77
      $region18: #{edge_encoder_forward.1} parent=11 // pred_check_branch
        %123 = sbr.rel (%p121) target = $region20
      $region19: #{edge_encoder_forward.1} parent=11 // pred_region
        _
      $region20: #{edge_encoder_forward.1} parent=11 // pred_fallthru
        _
    $region12: #{edge_encoder_forward.1} parent=5 // pred_fallthru
      _
    %p124 = scmp.lt.s32.totalorder %s9, 2
    // Predicated region
    $region21: #{edge_encoder_forward.1} parent=5 // pred_check
      %p125 = pneg %p124
    $region22: #{edge_encoder_forward.1} parent=5 // pred_check_branch
      %127 = sbr.rel (%p125) target = $region24
    $region23: #{edge_encoder_forward.1} parent=5 // pred_region
      // Predicated region
      $region25: #{edge_encoder_forward.1} parent=23 // pred_check
        %p128 = pneg %p29
      $region26: #{edge_encoder_forward.1} parent=23 // pred_check_branch
        %130 = sbr.rel (%p128) target = $region28
      $region27: #{edge_encoder_forward.1} parent=23 // pred_region
        %s131 = smul.u32 19, %s9
        %p132 = scmp.lt.s32.totalorder %s131, 37
        %s133 = scalar_select %p132, %s131, 37
        %s134 = smul.addr %s133, 4
        %s135 = scalar_lea.vmem %s0, %s134
        %s136 = smul.u32 19, %s9
      $region28: #{edge_encoder_forward.1} parent=23 // pred_fallthru
        _
    $region24: #{edge_encoder_forward.1} parent=5 // pred_fallthru
      _
    %p137 = scmp.le.s32.totalorder 1, %s9
    %p138 = scmp.lt.s32.totalorder %s9, 3
    %p139 = pnand %p137, %p138
    %p140 = pneg %p139
    // Predicated region
    $region29: #{edge_encoder_forward.1} parent=5 // pred_check
      _
    $region30: #{edge_encoder_forward.1} parent=5 // pred_check_branch
      %142 = sbr.rel (%p139) target = $region32
    $region31: #{edge_encoder_forward.1} parent=5 // pred_region
      %s143 = ssub.s32 %s9, 1
      %s144 = smul.u32 19, %s14
      %p145 = scmp.lt.s32.totalorder %s144, 37
      %s146 = scalar_select %p145, %s144, 37
      %s147 = smul.addr %s146, 4
      %s148 = scalar_lea.vmem %s0, %s147
      %p149 = pneg %p35
      %p150 = pneg %p32
      %p151 = pneg %p56
      %p152 = pneg %p53
      %p153 = pneg %p77
      %p154 = pneg %p74
      %p155 = pneg %p103
      %p156 = pneg %p100
      %s157 = smul.u32 19, %s14
      %p158 = scmp.lt.s32.totalorder %s157, 37
      %s159 = scalar_select %p158, %s157, 37
      %s160 = smul.addr %s159, 8
      %s161 = scalar_lea.vmem %s3, %s160
      %s162 = smul.u32 19, %s14
      %p163 = scmp.lt.s32.totalorder %s162, 37
      %s164 = scalar_select %p163, %s162, 37
      %s165 = smul.addr %s164, 4
      %s166 = scalar_lea.vmem %s0, %s165
      %s167 = smul.u32 19, %s14
      %s168 = smul.u32 19, %s14
      %p169 = scmp.lt.s32.totalorder %s168, 37
      %s170 = scalar_select %p169, %s168, 37
      %s171 = smul.addr %s170, 8
      %s172 = scalar_lea.vmem %s3, %s171
      %s173 = smul.u32 19, %s14
      %v175 = vld [vmem:[%s166] sm:$0xf]
      %v176 = vld [vmem:[%s166 + $0x4] sm:$0xf]
      %v177 = vld [vmem:[%s166 + $0x8] sm:$0xf]
      %v178 = vld [vmem:[%s166 + $0xc] sm:$0xf]
      %v179 = vld [vmem:[%s166 + $0x10] sm:$0xf]
      %v180 = vld [vmem:[%s166 + $0x14] sm:$0xf]
      %v181 = vld [vmem:[%s166 + $0x18] sm:$0xf]
      %v182 = vld [vmem:[%s166 + $0x1c] sm:$0xf]
      %v183 = vld [vmem:[%s166 + $0x20] sm:$0xf]
      %v184 = vld [vmem:[%s166 + $0x24] sm:$0xf]
      %v185 = vld [vmem:[%s166 + $0x28] sm:$0xf]
      %v186 = vld [vmem:[%s166 + $0x2c] sm:$0xf]
      %v187 = vld [vmem:[%s166 + $0x30] sm:$0xf]
      %v188 = vld [vmem:[%s166 + $0x34] sm:$0xf]
      %v189 = vld [vmem:[%s166 + $0x38] sm:$0xf]
      %v190 = vld [vmem:[%s166 + $0x3c] sm:$0xf]
      %v191 = vld [vmem:[%s166 + $0x40] sm:$0xf]
      %v192 = vld [vmem:[%s166 + $0x44] sm:$0xf]
      %v193 = vld [vmem:[%s166 + $0x48] sm:$0xf]
      %v194 = vld [vmem:[%s2] sm:$0xf]
      %v195 = vld [vmem:[%s1] sm:$0xf]
      %v196 = vld [vmem:[%s1 + $0x4] sm:$0xf]
      %v197 = vld [vmem:[%s1 + $0x8] sm:$0xf]
      %v198 = vld [vmem:[%s1 + $0xc] sm:$0xf]
      %v199 = vld [vmem:[%s1 + $0x10] sm:$0xf]
      %v200 = vld [vmem:[%s1 + $0x14] sm:$0xf]
      %v201 = vld [vmem:[%s1 + $0x18] sm:$0xf]
      %v202 = vld [vmem:[%s1 + $0x1c] sm:$0xf]
      %v203 = vld [vmem:[%s1 + $0x20] sm:$0xf]
      %v204 = vld [vmem:[%s1 + $0x24] sm:$0xf]
      %v205 = vld [vmem:[%s1 + $0x28] sm:$0xf]
      %v206 = vld [vmem:[%s1 + $0x2c] sm:$0xf]
      %v207 = vld [vmem:[%s1 + $0x30] sm:$0xf]
      %v208 = vld [vmem:[%s1 + $0x34] sm:$0xf]
      %v209 = vld [vmem:[%s1 + $0x38] sm:$0xf]
      %v210 = vld [vmem:[%s1 + $0x3c] sm:$0xf]
      %v211 = vld [vmem:[%s1 + $0x40] sm:$0xf]
      %v212 = vld [vmem:[%s1 + $0x44] sm:$0xf]
      %v213 = vld [vmem:[%s1 + $0x48] sm:$0xf]
      %v214 = vld [vmem:[%s1 + $0x4c] sm:$0xf]
      %v215 = vld [vmem:[%s1 + $0x50] sm:$0xf]
      %v216 = vld [vmem:[%s1 + $0x54] sm:$0xf]
      %v217 = vld [vmem:[%s1 + $0x58] sm:$0xf]
      %v218 = vld [vmem:[%s1 + $0x5c] sm:$0xf]
      %v219 = vld [vmem:[%s1 + $0x60] sm:$0xf]
      %v220 = vld [vmem:[%s1 + $0x64] sm:$0xf]
      %v221 = vld [vmem:[%s1 + $0x68] sm:$0xf]
      %v222 = vld [vmem:[%s1 + $0x6c] sm:$0xf]
      %v223 = vld [vmem:[%s1 + $0x70] sm:$0xf]
      %v224 = vld [vmem:[%s1 + $0x74] sm:$0xf]
      %v225 = vld [vmem:[%s1 + $0x78] sm:$0xf]
      %v226 = vld [vmem:[%s1 + $0x7c] sm:$0xf]
      %v227 = vld [vmem:[%s1 + $0x80] sm:$0xf]
      %v228 = vld [vmem:[%s1 + $0x84] sm:$0xf]
      %v229 = vld [vmem:[%s1 + $0x88] sm:$0xf]
      %v230 = vld [vmem:[%s1 + $0x8c] sm:$0xf]
      %v231 = vld [vmem:[%s1 + $0x90] sm:$0xf]
      %v232 = vld [vmem:[%s1 + $0x94] sm:$0xf]
      %v233 = vld [vmem:[%s1 + $0x98] sm:$0xf]
      %v234 = vld [vmem:[%s1 + $0x9c] sm:$0xf]
      %v235 = vld [vmem:[%s1 + $0xa0] sm:$0xf]
      %v236 = vld [vmem:[%s1 + $0xa4] sm:$0xf]
      %v237 = vld [vmem:[%s1 + $0xa8] sm:$0xf]
      %v238 = vld [vmem:[%s1 + $0xac] sm:$0xf]
      %v239 = vld [vmem:[%s1 + $0xb0] sm:$0xf]
      %v240 = vld [vmem:[%s1 + $0xb4] sm:$0xf]
      %v241 = vld [vmem:[%s1 + $0xb8] sm:$0xf]
      %v242 = vld [vmem:[%s1 + $0xbc] sm:$0xf]
      %v243 = vld [vmem:[%s1 + $0xc0] sm:$0xf]
      %v244 = vlaneseq
      %v245 = vshrl.u32 %v244, 7
      %v246 = vsub.s32 0, %v245
      %v247 = vrot.slane %v194, %v246
      %v267 = vunpack.c.l.b16 %v175
      %v268 = vunpack.c.l.b16 %v176
      %v269 = vunpack.c.l.b16 %v177
      %v270 = vunpack.c.l.b16 %v178
      %v271 = vunpack.c.l.b16 %v179
      %v272 = vunpack.c.l.b16 %v180
      %v273 = vunpack.c.l.b16 %v181
      %v274 = vunpack.c.l.b16 %v182
      %v275 = vunpack.c.l.b16 %v183
      %v276 = vunpack.c.l.b16 %v184
      %v277 = vunpack.c.l.b16 %v185
      %v278 = vunpack.c.l.b16 %v186
      %v279 = vunpack.c.l.b16 %v187
      %v280 = vunpack.c.l.b16 %v188
      %v281 = vunpack.c.l.b16 %v189
      %v282 = vunpack.c.l.b16 %v190
      %v283 = vunpack.c.l.b16 %v191
      %v284 = vunpack.c.l.b16 %v192
      %v285 = vunpack.c.l.b16 %v193
      %v286 = vpack.c.b16 %v268, %v267
      %v287 = vpack.c.b16 %v270, %v269
      %v288 = vpack.c.b16 %v272, %v271
      %v289 = vpack.c.b16 %v274, %v273
      %v290 = vpack.c.b16 %v276, %v275
      %v291 = vpack.c.b16 %v278, %v277
      %v292 = vpack.c.b16 %v280, %v279
      %v293 = vpack.c.b16 %v282, %v281
      %v294 = vpack.c.b16 %v284, %v283
      %v295 = vpack.c.b16 %v285, %v285
      %vm296 = vcmask 64512
      %v298 = vsel %vm296, %v286, 0
      %v301 = vsel %vm296, %v287, 0
      %v304 = vsel %vm296, %v288, 0
      %v307 = vsel %vm296, %v289, 0
      %v310 = vsel %vm296, %v290, 0
      %v313 = vsel %vm296, %v291, 0
      %v316 = vsel %vm296, %v292, 0
      %v319 = vsel %vm296, %v293, 0
      %v322 = vsel %vm296, %v294, 0
      %v325 = vsel %vm296, %v295, 0
      %vm327 = vcmask 1043456
      %v329 = vsel %vm327, %v195, 0
      %331 = vmatprep.subr.bf16.mxu0 0
      %332 = vmatpush1.bf16.msra.mxu0 %v329
      %333 = vmatprep.subr.bf16.mxu0 0
      %334 = vmatpush1.bf16.msra.mxu0 0
      %335 = vmatprep.subr.bf16.mxu0 0
      %336 = vmatpush1.bf16.msra.mxu0 0
      %337 = vmatprep.subr.bf16.mxu0 0
      %338 = vmatpush1.bf16.msra.mxu0 0
      %339 = vmatprep.subr.bf16.mxu0 0
      %340 = vmatpush1.bf16.msra.mxu0 0
      %341 = vmatprep.subr.bf16.mxu0 0
      %342 = vmatpush1.bf16.msra.mxu0 0
      %343 = vmatprep.subr.bf16.mxu0 0
      %344 = vmatpush1.bf16.msra.mxu0 0
      %345 = vmatprep.subr.bf16.mxu0 0
      %346 = vmatpush1.bf16.msra.mxu0 0
      %347 = vmatprep.subr.bf16.mxu0 0
      %348 = vmatpush1.bf16.msra.mxu0 0
      %349 = vmatprep.subr.bf16.mxu0 0
      %350 = vmatpush1.bf16.msra.mxu0 0
      %351 = vmatprep.subr.bf16.mxu0 0
      %352 = vmatpush1.bf16.msra.mxu0 0
      %353 = vmatprep.subr.bf16.mxu0 0
      %354 = vmatpush1.bf16.msra.mxu0 0
      %355 = vmatprep.subr.bf16.mxu0 0
      %356 = vmatpush1.bf16.msra.mxu0 0
      %357 = vmatprep.subr.bf16.mxu0 0
      %358 = vmatpush1.bf16.msra.mxu0 0
      %359 = vmatprep.subr.bf16.mxu0 0
      %360 = vmatpush1.bf16.msra.mxu0 0
      %361 = vmatprep.subr.bf16.mxu0 0
      %362 = vmatpush1.bf16.msra.mxu0 0
      %363 = vmatprep.mubr.bf16.mxu0 0
      %364 = vmatmul.mubr.bf16.gmra.mrb[0].mxu0 %v298
      %v365 = vpop.f32.mrb[0].mxu0
      %v366 = vadd.f32 %v247, %v365
      %v367 = vpop.f32.mrb[0].mxu0
      %v368 = vpop.f32.mrb[0].mxu0
      %v369 = vadd.f32 %v247, %v368
      %v370 = vpop.f32.mrb[0].mxu0
      %371 = vmatprep.mubr.bf16.mxu0 0
      %372 = vmatmul.mubr.bf16.gmra.mrb[0].mxu0 %v301
      %v373 = vpop.f32.mrb[0].mxu0
      %v374 = vadd.f32 %v247, %v373
      %v375 = vpop.f32.mrb[0].mxu0
      %v376 = vpop.f32.mrb[0].mxu0
      %v377 = vadd.f32 %v247, %v376
      %v378 = vpop.f32.mrb[0].mxu0
      %379 = vmatprep.mubr.bf16.mxu0 0
      %380 = vmatmul.mubr.bf16.gmra.mrb[0].mxu0 %v304
      %v381 = vpop.f32.mrb[0].mxu0
      %v382 = vadd.f32 %v247, %v381
      %v383 = vpop.f32.mrb[0].mxu0
      %v384 = vpop.f32.mrb[0].mxu0
      %v385 = vadd.f32 %v247, %v384
      %v386 = vpop.f32.mrb[0].mxu0
      %387 = vmatprep.mubr.bf16.mxu0 0
      %388 = vmatmul.mubr.bf16.gmra.mrb[0].mxu0 %v307
      %v389 = vpop.f32.mrb[0].mxu0
      %v390 = vadd.f32 %v247, %v389
      %v391 = vpop.f32.mrb[0].mxu0
      %v392 = vpop.f32.mrb[0].mxu0
      %v393 = vadd.f32 %v247, %v392
      %v394 = vpop.f32.mrb[0].mxu0
      %395 = vmatprep.mubr.bf16.mxu0 0
      %396 = vmatmul.mubr.bf16.gmra.mrb[0].mxu0 %v310
      %v397 = vpop.f32.mrb[0].mxu0
      %v398 = vadd.f32 %v247, %v397
      %v399 = vpop.f32.mrb[0].mxu0
      %v400 = vpop.f32.mrb[0].mxu0
      %v401 = vadd.f32 %v247, %v400
      %v402 = vpop.f32.mrb[0].mxu0
      %403 = vmatprep.mubr.bf16.mxu0 0
      %404 = vmatmul.mubr.bf16.gmra.mrb[0].mxu0 %v313
      %v405 = vpop.f32.mrb[0].mxu0
      %v406 = vadd.f32 %v247, %v405
      %v407 = vpop.f32.mrb[0].mxu0
      %v408 = vpop.f32.mrb[0].mxu0
      %v409 = vadd.f32 %v247, %v408
      %v410 = vpop.f32.mrb[0].mxu0
      %411 = vmatprep.mubr.bf16.mxu0 0
      %412 = vmatmul.mubr.bf16.gmra.mrb[0].mxu0 %v316
      %v413 = vpop.f32.mrb[0].mxu0
      %v414 = vadd.f32 %v247, %v413
      %v415 = vpop.f32.mrb[0].mxu0
      %v416 = vpop.f32.mrb[0].mxu0
      %v417 = vadd.f32 %v247, %v416
      %v418 = vpop.f32.mrb[0].mxu0
      %419 = vmatprep.mubr.bf16.mxu0 0
      %420 = vmatmul.mubr.bf16.gmra.mrb[0].mxu0 %v319
      %v421 = vpop.f32.mrb[0].mxu0
      %v422 = vadd.f32 %v247, %v421
      %v423 = vpop.f32.mrb[0].mxu0
      %v424 = vpop.f32.mrb[0].mxu0
      %v425 = vadd.f32 %v247, %v424
      %v426 = vpop.f32.mrb[0].mxu0
      %427 = vmatprep.mubr.bf16.mxu0 0
      %428 = vmatmul.mubr.bf16.gmra.mrb[0].mxu0 %v322
      %v429 = vpop.f32.mrb[0].mxu0
      %v430 = vadd.f32 %v247, %v429
      %v431 = vpop.f32.mrb[0].mxu0
      %v432 = vpop.f32.mrb[0].mxu0
      %v433 = vadd.f32 %v247, %v432
      %v434 = vpop.f32.mrb[0].mxu0
      %435 = vmatprep.mubr.bf16.mxu0 0
      %436 = vmatmul.mubr.bf16.gmra.mrb[0].mxu0 %v325
      %v437 = vpop.f32.mrb[0].mxu0
      %v438 = vadd.f32 %v247, %v437
      %v439 = vpop.f32.mrb[0].mxu0
      %v440 = vpop.f32.mrb[0].mxu0
      %v441 = vpop.f32.mrb[0].mxu0
      %442 = vdwg.mxu0
      %v443 = vmax.f32 %v366, 0.0
      %v444 = vmax.f32 %v369, 0.0
      %v445 = vmax.f32 %v374, 0.0
      %v446 = vmax.f32 %v377, 0.0
      %v447 = vmax.f32 %v382, 0.0
      %v448 = vmax.f32 %v385, 0.0
      %v449 = vmax.f32 %v390, 0.0
      %v450 = vmax.f32 %v393, 0.0
      %v451 = vmax.f32 %v398, 0.0
      %v452 = vmax.f32 %v401, 0.0
      %v453 = vmax.f32 %v406, 0.0
      %v454 = vmax.f32 %v409, 0.0
      %v455 = vmax.f32 %v414, 0.0
      %v456 = vmax.f32 %v417, 0.0
      %v457 = vmax.f32 %v422, 0.0
      %v458 = vmax.f32 %v425, 0.0
      %v459 = vmax.f32 %v430, 0.0
      %v460 = vmax.f32 %v433, 0.0
      %v461 = vmax.f32 %v438, 0.0
      %v462 = vpack.c.bf16 %v444, %v443
      %v463 = vpack.c.bf16 %v446, %v445
      %v464 = vpack.c.bf16 %v448, %v447
      %v465 = vpack.c.bf16 %v450, %v449
      %v466 = vpack.c.bf16 %v452, %v451
      %v467 = vpack.c.bf16 %v454, %v453
      %v468 = vpack.c.bf16 %v456, %v455
      %v469 = vpack.c.bf16 %v458, %v457
      %v470 = vpack.c.bf16 %v460, %v459
      %v471 = vpack.c.bf16 %v461, %v461
      %v472 = vlaneseq
      %v473 = vshrl.u32 %v472, 7
      %v474 = vsub.s32 1, %v473
      %v475 = vrot.slane %v194, %v474
      %v492 = vunpack.c.l.b16 %v196
      %v493 = vunpack.c.l.b16 %v197
      %v494 = vunpack.c.l.b16 %v198
      %v495 = vunpack.c.l.b16 %v199
      %v496 = vunpack.c.l.b16 %v200
      %v497 = vunpack.c.l.b16 %v201
      %v498 = vunpack.c.l.b16 %v202
      %v499 = vunpack.c.l.b16 %v203
      %v500 = vunpack.c.l.b16 %v204
      %v501 = vunpack.c.l.b16 %v205
      %v502 = vunpack.c.l.b16 %v206
      %v503 = vunpack.c.l.b16 %v207
      %v504 = vunpack.c.l.b16 %v208
      %v505 = vunpack.c.l.b16 %v209
      %v506 = vunpack.c.l.b16 %v210
      %v507 = vunpack.c.l.b16 %v211
      %v508 = vpack.c.b16 %v493, %v492
      %v509 = vpack.c.b16 %v495, %v494
      %v510 = vpack.c.b16 %v497, %v496
      %v511 = vpack.c.b16 %v499, %v498
      %v512 = vpack.c.b16 %v501, %v500
      %v513 = vpack.c.b16 %v503, %v502
      %v514 = vpack.c.b16 %v505, %v504
      %v515 = vpack.c.b16 %v507, %v506
      %524 = vmatprep.subr.bf16.mxu0 0
      %525 = vmatpush1.bf16.msra.mxu0 %v508
      %526 = vmatprep.subr.bf16.mxu0 0
      %527 = vmatpush1.bf16.msra.mxu0 %v509
      %528 = vmatprep.subr.bf16.mxu0 0
      %529 = vmatpush1.bf16.msra.mxu0 %v510
      %530 = vmatprep.subr.bf16.mxu0 0
      %531 = vmatpush1.bf16.msra.mxu0 %v511
      %532 = vmatprep.subr.bf16.mxu0 0
      %533 = vmatpush1.bf16.msra.mxu0 %v512
      %534 = vmatprep.subr.bf16.mxu0 0
      %535 = vmatpush1.bf16.msra.mxu0 %v513
      %536 = vmatprep.subr.bf16.mxu0 0
      %537 = vmatpush1.bf16.msra.mxu0 %v514
      %538 = vmatprep.subr.bf16.mxu0 0
      %539 = vmatpush1.bf16.msra.mxu0 %v515
      %540 = vmatprep.subr.bf16.mxu0 0
      %541 = vmatpush1.bf16.msra.mxu0 0
      %542 = vmatprep.subr.bf16.mxu0 0
      %543 = vmatpush1.bf16.msra.mxu0 0
      %544 = vmatprep.subr.bf16.mxu0 0
      %545 = vmatpush1.bf16.msra.mxu0 0
      %546 = vmatprep.subr.bf16.mxu0 0
      %547 = vmatpush1.bf16.msra.mxu0 0
      %548 = vmatprep.subr.bf16.mxu0 0
      %549 = vmatpush1.bf16.msra.mxu0 0
      %550 = vmatprep.subr.bf16.mxu0 0
      %551 = vmatpush1.bf16.msra.mxu0 0
      %552 = vmatprep.subr.bf16.mxu0 0
      %553 = vmatpush1.bf16.msra.mxu0 0
      %554 = vmatprep.subr.bf16.mxu0 0
      %555 = vmatpush1.bf16.msra.mxu0 0
      %556 = vmatprep.mubr.bf16.mxu0 0
      %557 = vmatmul.mubr.bf16.gmra.mrb[0].mxu0 %v462
      %v558 = vpop.f32.mrb[0].mxu0
      %v559 = vadd.f32 %v475, %v558
      %v560 = vpop.f32.mrb[0].mxu0
      %v561 = vpop.f32.mrb[0].mxu0
      %v562 = vadd.f32 %v475, %v561
      %v563 = vpop.f32.mrb[0].mxu0
      %564 = vmatprep.mubr.bf16.mxu0 0
      %565 = vmatmul.mubr.bf16.gmra.mrb[0].mxu0 %v463
      %v566 = vpop.f32.mrb[0].mxu0
      %v567 = vadd.f32 %v475, %v566
      %v568 = vpop.f32.mrb[0].mxu0
      %v569 = vpop.f32.mrb[0].mxu0
      %v570 = vadd.f32 %v475, %v569
      %v571 = vpop.f32.mrb[0].mxu0
      %572 = vmatprep.mubr.bf16.mxu0 0
      %573 = vmatmul.mubr.bf16.gmra.mrb[0].mxu0 %v464
      %v574 = vpop.f32.mrb[0].mxu0
      %v575 = vadd.f32 %v475, %v574
      %v576 = vpop.f32.mrb[0].mxu0
      %v577 = vpop.f32.mrb[0].mxu0
      %v578 = vadd.f32 %v475, %v577
      %v579 = vpop.f32.mrb[0].mxu0
      %580 = vmatprep.mubr.bf16.mxu0 0
      %581 = vmatmul.mubr.bf16.gmra.mrb[0].mxu0 %v465
      %v582 = vpop.f32.mrb[0].mxu0
      %v583 = vadd.f32 %v475, %v582
      %v584 = vpop.f32.mrb[0].mxu0
      %v585 = vpop.f32.mrb[0].mxu0
      %v586 = vadd.f32 %v475, %v585
      %v587 = vpop.f32.mrb[0].mxu0
      %588 = vmatprep.mubr.bf16.mxu0 0
      %589 = vmatmul.mubr.bf16.gmra.mrb[0].mxu0 %v466
      %v590 = vpop.f32.mrb[0].mxu0
      %v591 = vadd.f32 %v475, %v590
      %v592 = vpop.f32.mrb[0].mxu0
      %v593 = vpop.f32.mrb[0].mxu0
      %v594 = vadd.f32 %v475, %v593
      %v595 = vpop.f32.mrb[0].mxu0
      %596 = vmatprep.mubr.bf16.mxu0 0
      %597 = vmatmul.mubr.bf16.gmra.mrb[0].mxu0 %v467
      %v598 = vpop.f32.mrb[0].mxu0
      %v599 = vadd.f32 %v475, %v598
      %v600 = vpop.f32.mrb[0].mxu0
      %v601 = vpop.f32.mrb[0].mxu0
      %v602 = vadd.f32 %v475, %v601
      %v603 = vpop.f32.mrb[0].mxu0
      %604 = vmatprep.mubr.bf16.mxu0 0
      %605 = vmatmul.mubr.bf16.gmra.mrb[0].mxu0 %v468
      %v606 = vpop.f32.mrb[0].mxu0
      %v607 = vadd.f32 %v475, %v606
      %v608 = vpop.f32.mrb[0].mxu0
      %v609 = vpop.f32.mrb[0].mxu0
      %v610 = vadd.f32 %v475, %v609
      %v611 = vpop.f32.mrb[0].mxu0
      %612 = vmatprep.mubr.bf16.mxu0 0
      %613 = vmatmul.mubr.bf16.gmra.mrb[0].mxu0 %v469
      %v614 = vpop.f32.mrb[0].mxu0
      %v615 = vadd.f32 %v475, %v614
      %v616 = vpop.f32.mrb[0].mxu0
      %v617 = vpop.f32.mrb[0].mxu0
      %v618 = vadd.f32 %v475, %v617
      %v619 = vpop.f32.mrb[0].mxu0
      %620 = vmatprep.mubr.bf16.mxu0 0
      %621 = vmatmul.mubr.bf16.gmra.mrb[0].mxu0 %v470
      %v622 = vpop.f32.mrb[0].mxu0
      %v623 = vadd.f32 %v475, %v622
      %v624 = vpop.f32.mrb[0].mxu0
      %v625 = vpop.f32.mrb[0].mxu0
      %v626 = vadd.f32 %v475, %v625
      %v627 = vpop.f32.mrb[0].mxu0
      %628 = vmatprep.mubr.bf16.mxu0 0
      %629 = vmatmul.mubr.bf16.gmra.mrb[0].mxu0 %v471
      %v630 = vpop.f32.mrb[0].mxu0
      %v631 = vadd.f32 %v475, %v630
      %v632 = vpop.f32.mrb[0].mxu0
      %v633 = vpop.f32.mrb[0].mxu0
      %v634 = vpop.f32.mrb[0].mxu0
      %635 = vdwg.mxu0
      %v636 = vmax.f32 %v559, 0.0
      %v637 = vmax.f32 %v562, 0.0
      %v638 = vmax.f32 %v567, 0.0
      %v639 = vmax.f32 %v570, 0.0
      %v640 = vmax.f32 %v575, 0.0
      %v641 = vmax.f32 %v578, 0.0
      %v642 = vmax.f32 %v583, 0.0
      %v643 = vmax.f32 %v586, 0.0
      %v644 = vmax.f32 %v591, 0.0
      %v645 = vmax.f32 %v594, 0.0
      %v646 = vmax.f32 %v599, 0.0
      %v647 = vmax.f32 %v602, 0.0
      %v648 = vmax.f32 %v607, 0.0
      %v649 = vmax.f32 %v610, 0.0
      %v650 = vmax.f32 %v615, 0.0
      %v651 = vmax.f32 %v618, 0.0
      %v652 = vmax.f32 %v623, 0.0
      %v653 = vmax.f32 %v626, 0.0
      %v654 = vmax.f32 %v631, 0.0
      %v655 = vpack.c.bf16 %v637, %v636
      %v656 = vpack.c.bf16 %v639, %v638
      %v657 = vpack.c.bf16 %v641, %v640
      %v658 = vpack.c.bf16 %v643, %v642
      %v659 = vpack.c.bf16 %v645, %v644
      %v660 = vpack.c.bf16 %v647, %v646
      %v661 = vpack.c.bf16 %v649, %v648
      %v662 = vpack.c.bf16 %v651, %v650
      %v663 = vpack.c.bf16 %v653, %v652
      %v664 = vpack.c.bf16 %v654, %v654
      %v665 = vlaneseq
      %v666 = vshrl.u32 %v665, 7
      %v667 = vsub.s32 2, %v666
      %v668 = vrot.slane %v194, %v667
      %v685 = vunpack.c.l.b16 %v212
      %v686 = vunpack.c.l.b16 %v213
      %v687 = vunpack.c.l.b16 %v214
      %v688 = vunpack.c.l.b16 %v215
      %v689 = vunpack.c.l.b16 %v216
      %v690 = vunpack.c.l.b16 %v217
      %v691 = vunpack.c.l.b16 %v218
      %v692 = vunpack.c.l.b16 %v219
      %v693 = vunpack.c.l.b16 %v220
      %v694 = vunpack.c.l.b16 %v221
      %v695 = vunpack.c.l.b16 %v222
      %v696 = vunpack.c.l.b16 %v223
      %v697 = vunpack.c.l.b16 %v224
      %v698 = vunpack.c.l.b16 %v225
      %v699 = vunpack.c.l.b16 %v226
      %v700 = vunpack.c.l.b16 %v227
      %v701 = vpack.c.b16 %v686, %v685
      %v702 = vpack.c.b16 %v688, %v687
      %v703 = vpack.c.b16 %v690, %v689
      %v704 = vpack.c.b16 %v692, %v691
      %v705 = vpack.c.b16 %v694, %v693
      %v706 = vpack.c.b16 %v696, %v695
      %v707 = vpack.c.b16 %v698, %v697
      %v708 = vpack.c.b16 %v700, %v699
      %717 = vmatprep.subr.bf16.mxu0 0
      %718 = vmatpush1.bf16.msra.mxu0 %v701
      %719 = vmatprep.subr.bf16.mxu0 0
      %720 = vmatpush1.bf16.msra.mxu0 %v702
      %721 = vmatprep.subr.bf16.mxu0 0
      %722 = vmatpush1.bf16.msra.mxu0 %v703
      %723 = vmatprep.subr.bf16.mxu0 0
      %724 = vmatpush1.bf16.msra.mxu0 %v704
      %725 = vmatprep.subr.bf16.mxu0 0
      %726 = vmatpush1.bf16.msra.mxu0 %v705
      %727 = vmatprep.subr.bf16.mxu0 0
      %728 = vmatpush1.bf16.msra.mxu0 %v706
      %729 = vmatprep.subr.bf16.mxu0 0
      %730 = vmatpush1.bf16.msra.mxu0 %v707
      %731 = vmatprep.subr.bf16.mxu0 0
      %732 = vmatpush1.bf16.msra.mxu0 %v708
      %733 = vmatprep.subr.bf16.mxu0 0
      %734 = vmatpush1.bf16.msra.mxu0 0
      %735 = vmatprep.subr.bf16.mxu0 0
      %736 = vmatpush1.bf16.msra.mxu0 0
      %737 = vmatprep.subr.bf16.mxu0 0
      %738 = vmatpush1.bf16.msra.mxu0 0
      %739 = vmatprep.subr.bf16.mxu0 0
      %740 = vmatpush1.bf16.msra.mxu0 0
      %741 = vmatprep.subr.bf16.mxu0 0
      %742 = vmatpush1.bf16.msra.mxu0 0
      %743 = vmatprep.subr.bf16.mxu0 0
      %744 = vmatpush1.bf16.msra.mxu0 0
      %745 = vmatprep.subr.bf16.mxu0 0
      %746 = vmatpush1.bf16.msra.mxu0 0
      %747 = vmatprep.subr.bf16.mxu0 0
      %748 = vmatpush1.bf16.msra.mxu0 0
      %749 = vmatprep.mubr.bf16.mxu0 0
      %750 = vmatmul.mubr.bf16.gmra.mrb[0].mxu0 %v655
      %v751 = vpop.f32.mrb[0].mxu0
      %v752 = vadd.f32 %v668, %v751
      %v753 = vpop.f32.mrb[0].mxu0
      %v754 = vpop.f32.mrb[0].mxu0
      %v755 = vadd.f32 %v668, %v754
      %v756 = vpop.f32.mrb[0].mxu0
      %757 = vmatprep.mubr.bf16.mxu0 0
      %758 = vmatmul.mubr.bf16.gmra.mrb[0].mxu0 %v656
      %v759 = vpop.f32.mrb[0].mxu0
      %v760 = vadd.f32 %v668, %v759
      %v761 = vpop.f32.mrb[0].mxu0
      %v762 = vpop.f32.mrb[0].mxu0
      %v763 = vadd.f32 %v668, %v762
      %v764 = vpop.f32.mrb[0].mxu0
      %765 = vmatprep.mubr.bf16.mxu0 0
      %766 = vmatmul.mubr.bf16.gmra.mrb[0].mxu0 %v657
      %v767 = vpop.f32.mrb[0].mxu0
      %v768 = vadd.f32 %v668, %v767
      %v769 = vpop.f32.mrb[0].mxu0
      %v770 = vpop.f32.mrb[0].mxu0
      %v771 = vadd.f32 %v668, %v770
      %v772 = vpop.f32.mrb[0].mxu0
      %773 = vmatprep.mubr.bf16.mxu0 0
      %774 = vmatmul.mubr.bf16.gmra.mrb[0].mxu0 %v658
      %v775 = vpop.f32.mrb[0].mxu0
      %v776 = vadd.f32 %v668, %v775
      %v777 = vpop.f32.mrb[0].mxu0
      %v778 = vpop.f32.mrb[0].mxu0
      %v779 = vadd.f32 %v668, %v778
      %v780 = vpop.f32.mrb[0].mxu0
      %781 = vmatprep.mubr.bf16.mxu0 0
      %782 = vmatmul.mubr.bf16.gmra.mrb[0].mxu0 %v659
      %v783 = vpop.f32.mrb[0].mxu0
      %v784 = vadd.f32 %v668, %v783
      %v785 = vpop.f32.mrb[0].mxu0
      %v786 = vpop.f32.mrb[0].mxu0
      %v787 = vadd.f32 %v668, %v786
      %v788 = vpop.f32.mrb[0].mxu0
      %789 = vmatprep.mubr.bf16.mxu0 0
      %790 = vmatmul.mubr.bf16.gmra.mrb[0].mxu0 %v660
      %v791 = vpop.f32.mrb[0].mxu0
      %v792 = vadd.f32 %v668, %v791
      %v793 = vpop.f32.mrb[0].mxu0
      %v794 = vpop.f32.mrb[0].mxu0
      %v795 = vadd.f32 %v668, %v794
      %v796 = vpop.f32.mrb[0].mxu0
      %797 = vmatprep.mubr.bf16.mxu0 0
      %798 = vmatmul.mubr.bf16.gmra.mrb[0].mxu0 %v661
      %v799 = vpop.f32.mrb[0].mxu0
      %v800 = vadd.f32 %v668, %v799
      %v801 = vpop.f32.mrb[0].mxu0
      %v802 = vpop.f32.mrb[0].mxu0
      %v803 = vadd.f32 %v668, %v802
      %v804 = vpop.f32.mrb[0].mxu0
      %805 = vmatprep.mubr.bf16.mxu0 0
      %806 = vmatmul.mubr.bf16.gmra.mrb[0].mxu0 %v662
      %v807 = vpop.f32.mrb[0].mxu0
      %v808 = vadd.f32 %v668, %v807
      %v809 = vpop.f32.mrb[0].mxu0
      %v810 = vpop.f32.mrb[0].mxu0
      %v811 = vadd.f32 %v668, %v810
      %v812 = vpop.f32.mrb[0].mxu0
      %813 = vmatprep.mubr.bf16.mxu0 0
      %814 = vmatmul.mubr.bf16.gmra.mrb[0].mxu0 %v663
      %v815 = vpop.f32.mrb[0].mxu0
      %v816 = vadd.f32 %v668, %v815
      %v817 = vpop.f32.mrb[0].mxu0
      %v818 = vpop.f32.mrb[0].mxu0
      %v819 = vadd.f32 %v668, %v818
      %v820 = vpop.f32.mrb[0].mxu0
      %821 = vmatprep.mubr.bf16.mxu0 0
      %822 = vmatmul.mubr.bf16.gmra.mrb[0].mxu0 %v664
      %v823 = vpop.f32.mrb[0].mxu0
      %v824 = vadd.f32 %v668, %v823
      %v825 = vpop.f32.mrb[0].mxu0
      %v826 = vpop.f32.mrb[0].mxu0
      %v827 = vpop.f32.mrb[0].mxu0
      %828 = vdwg.mxu0
      %v829 = vmax.f32 %v752, 0.0
      %v830 = vmax.f32 %v755, 0.0
      %v831 = vmax.f32 %v760, 0.0
      %v832 = vmax.f32 %v763, 0.0
      %v833 = vmax.f32 %v768, 0.0
      %v834 = vmax.f32 %v771, 0.0
      %v835 = vmax.f32 %v776, 0.0
      %v836 = vmax.f32 %v779, 0.0
      %v837 = vmax.f32 %v784, 0.0
      %v838 = vmax.f32 %v787, 0.0
      %v839 = vmax.f32 %v792, 0.0
      %v840 = vmax.f32 %v795, 0.0
      %v841 = vmax.f32 %v800, 0.0
      %v842 = vmax.f32 %v803, 0.0
      %v843 = vmax.f32 %v808, 0.0
      %v844 = vmax.f32 %v811, 0.0
      %v845 = vmax.f32 %v816, 0.0
      %v846 = vmax.f32 %v819, 0.0
      %v847 = vmax.f32 %v824, 0.0
      %v848 = vpack.c.bf16 %v830, %v829
      %v849 = vpack.c.bf16 %v832, %v831
      %v850 = vpack.c.bf16 %v834, %v833
      %v851 = vpack.c.bf16 %v836, %v835
      %v852 = vpack.c.bf16 %v838, %v837
      %v853 = vpack.c.bf16 %v840, %v839
      %v854 = vpack.c.bf16 %v842, %v841
      %v855 = vpack.c.bf16 %v844, %v843
      %v856 = vpack.c.bf16 %v846, %v845
      %v857 = vpack.c.bf16 %v847, %v847
      %v858 = vlaneseq
      %v859 = vshrl.u32 %v858, 7
      %v860 = vsub.s32 3, %v859
      %v861 = vrot.slane %v194, %v860
      %v878 = vunpack.c.l.b16 %v228
      %v879 = vunpack.c.l.b16 %v229
      %v880 = vunpack.c.l.b16 %v230
      %v881 = vunpack.c.l.b16 %v231
      %v882 = vunpack.c.l.b16 %v232
      %v883 = vunpack.c.l.b16 %v233
      %v884 = vunpack.c.l.b16 %v234
      %v885 = vunpack.c.l.b16 %v235
      %v886 = vunpack.c.l.b16 %v236
      %v887 = vunpack.c.l.b16 %v237
      %v888 = vunpack.c.l.b16 %v238
      %v889 = vunpack.c.l.b16 %v239
      %v890 = vunpack.c.l.b16 %v240
      %v891 = vunpack.c.l.b16 %v241
      %v892 = vunpack.c.l.b16 %v242
      %v893 = vunpack.c.l.b16 %v243
      %v894 = vpack.c.b16 %v879, %v878
      %v895 = vpack.c.b16 %v881, %v880
      %v896 = vpack.c.b16 %v883, %v882
      %v897 = vpack.c.b16 %v885, %v884
      %v898 = vpack.c.b16 %v887, %v886
      %v899 = vpack.c.b16 %v889, %v888
      %v900 = vpack.c.b16 %v891, %v890
      %v901 = vpack.c.b16 %v893, %v892
      %910 = vmatprep.subr.bf16.mxu0 0
      %911 = vmatpush1.bf16.msra.mxu0 %v894
      %912 = vmatprep.subr.bf16.mxu0 0
      %913 = vmatpush1.bf16.msra.mxu0 %v895
      %914 = vmatprep.subr.bf16.mxu0 0
      %915 = vmatpush1.bf16.msra.mxu0 %v896
      %916 = vmatprep.subr.bf16.mxu0 0
      %917 = vmatpush1.bf16.msra.mxu0 %v897
      %918 = vmatprep.subr.bf16.mxu0 0
      %919 = vmatpush1.bf16.msra.mxu0 %v898
      %920 = vmatprep.subr.bf16.mxu0 0
      %921 = vmatpush1.bf16.msra.mxu0 %v899
      %922 = vmatprep.subr.bf16.mxu0 0
      %923 = vmatpush1.bf16.msra.mxu0 %v900
      %924 = vmatprep.subr.bf16.mxu0 0
      %925 = vmatpush1.bf16.msra.mxu0 %v901
      %926 = vmatprep.subr.bf16.mxu0 0
      %927 = vmatpush1.bf16.msra.mxu0 0
      %928 = vmatprep.subr.bf16.mxu0 0
      %929 = vmatpush1.bf16.msra.mxu0 0
      %930 = vmatprep.subr.bf16.mxu0 0
      %931 = vmatpush1.bf16.msra.mxu0 0
      %932 = vmatprep.subr.bf16.mxu0 0
      %933 = vmatpush1.bf16.msra.mxu0 0
      %934 = vmatprep.subr.bf16.mxu0 0
      %935 = vmatpush1.bf16.msra.mxu0 0
      %936 = vmatprep.subr.bf16.mxu0 0
      %937 = vmatpush1.bf16.msra.mxu0 0
      %938 = vmatprep.subr.bf16.mxu0 0
      %939 = vmatpush1.bf16.msra.mxu0 0
      %940 = vmatprep.subr.bf16.mxu0 0
      %941 = vmatpush1.bf16.msra.mxu0 0
      %942 = vmatprep.mubr.bf16.mxu0 0
      %943 = vmatmul.mubr.bf16.gmra.mrb[0].mxu0 %v848
      %v944 = vpop.f32.mrb[0].mxu0
      %v945 = vadd.f32 %v861, %v944
      %v946 = vpop.f32.mrb[0].mxu0
      %v947 = vpop.f32.mrb[0].mxu0
      %v948 = vadd.f32 %v861, %v947
      %v949 = vpop.f32.mrb[0].mxu0
      %950 = vmatprep.mubr.bf16.mxu0 0
      %951 = vmatmul.mubr.bf16.gmra.mrb[0].mxu0 %v849
      %v952 = vpop.f32.mrb[0].mxu0
      %v953 = vadd.f32 %v861, %v952
      %v954 = vpop.f32.mrb[0].mxu0
      %v955 = vpop.f32.mrb[0].mxu0
      %v956 = vadd.f32 %v861, %v955
      %v957 = vpop.f32.mrb[0].mxu0
      %958 = vmatprep.mubr.bf16.mxu0 0
      %959 = vmatmul.mubr.bf16.gmra.mrb[0].mxu0 %v850
      %v960 = vpop.f32.mrb[0].mxu0
      %v961 = vadd.f32 %v861, %v960
      %v962 = vpop.f32.mrb[0].mxu0
      %v963 = vpop.f32.mrb[0].mxu0
      %v964 = vadd.f32 %v861, %v963
      %v965 = vpop.f32.mrb[0].mxu0
      %966 = vmatprep.mubr.bf16.mxu0 0
      %967 = vmatmul.mubr.bf16.gmra.mrb[0].mxu0 %v851
      %v968 = vpop.f32.mrb[0].mxu0
      %v969 = vadd.f32 %v861, %v968
      %v970 = vpop.f32.mrb[0].mxu0
      %v971 = vpop.f32.mrb[0].mxu0
      %v972 = vadd.f32 %v861, %v971
      %v973 = vpop.f32.mrb[0].mxu0
      %974 = vmatprep.mubr.bf16.mxu0 0
      %975 = vmatmul.mubr.bf16.gmra.mrb[0].mxu0 %v852
      %v976 = vpop.f32.mrb[0].mxu0
      %v977 = vadd.f32 %v861, %v976
      %v978 = vpop.f32.mrb[0].mxu0
      %v979 = vpop.f32.mrb[0].mxu0
      %v980 = vadd.f32 %v861, %v979
      %v981 = vpop.f32.mrb[0].mxu0
      %982 = vmatprep.mubr.bf16.mxu0 0
      %983 = vmatmul.mubr.bf16.gmra.mrb[0].mxu0 %v853
      %v984 = vpop.f32.mrb[0].mxu0
      %v985 = vadd.f32 %v861, %v984
      %v986 = vpop.f32.mrb[0].mxu0
      %v987 = vpop.f32.mrb[0].mxu0
      %v988 = vadd.f32 %v861, %v987
      %v989 = vpop.f32.mrb[0].mxu0
      %990 = vmatprep.mubr.bf16.mxu0 0
      %991 = vmatmul.mubr.bf16.gmra.mrb[0].mxu0 %v854
      %v992 = vpop.f32.mrb[0].mxu0
      %v993 = vadd.f32 %v861, %v992
      %v994 = vpop.f32.mrb[0].mxu0
      %v995 = vpop.f32.mrb[0].mxu0
      %v996 = vadd.f32 %v861, %v995
      %v997 = vpop.f32.mrb[0].mxu0
      %998 = vmatprep.mubr.bf16.mxu0 0
      %999 = vmatmul.mubr.bf16.gmra.mrb[0].mxu0 %v855
      %v1000 = vpop.f32.mrb[0].mxu0
      %v1001 = vadd.f32 %v861, %v1000
      %v1002 = vpop.f32.mrb[0].mxu0
      %v1003 = vpop.f32.mrb[0].mxu0
      %v1004 = vadd.f32 %v861, %v1003
      %v1005 = vpop.f32.mrb[0].mxu0
      %1006 = vmatprep.mubr.bf16.mxu0 0
      %1007 = vmatmul.mubr.bf16.gmra.mrb[0].mxu0 %v856
      %v1008 = vpop.f32.mrb[0].mxu0
      %v1009 = vadd.f32 %v861, %v1008
      %v1010 = vpop.f32.mrb[0].mxu0
      %v1011 = vpop.f32.mrb[0].mxu0
      %v1012 = vadd.f32 %v861, %v1011
      %v1013 = vpop.f32.mrb[0].mxu0
      %1014 = vmatprep.mubr.bf16.mxu0 0
      %1015 = vmatmul.mubr.bf16.gmra.mrb[0].mxu0 %v857
      %v1016 = vpop.f32.mrb[0].mxu0
      %v1017 = vadd.f32 %v861, %v1016
      %v1018 = vpop.f32.mrb[0].mxu0
      %v1019 = vpop.f32.mrb[0].mxu0
      %v1020 = vpop.f32.mrb[0].mxu0
      %1021 = vdwg.mxu0
      %1022 = vst [vmem:[%s172] sm:$0xff] %v945
      %1023 = vst [vmem:[%s172 + $0x8] sm:$0xff] %v948
      %1024 = vst [vmem:[%s172 + $0x10] sm:$0xff] %v953
      %1025 = vst [vmem:[%s172 + $0x18] sm:$0xff] %v956
      %1026 = vst [vmem:[%s172 + $0x20] sm:$0xff] %v961
      %1027 = vst [vmem:[%s172 + $0x28] sm:$0xff] %v964
      %1028 = vst [vmem:[%s172 + $0x30] sm:$0xff] %v969
      %1029 = vst [vmem:[%s172 + $0x38] sm:$0xff] %v972
      %1030 = vst [vmem:[%s172 + $0x40] sm:$0xff] %v977
      %1031 = vst [vmem:[%s172 + $0x48] sm:$0xff] %v980
      %1032 = vst [vmem:[%s172 + $0x50] sm:$0xff] %v985
      %1033 = vst [vmem:[%s172 + $0x58] sm:$0xff] %v988
      %1034 = vst [vmem:[%s172 + $0x60] sm:$0xff] %v993
      %1035 = vst [vmem:[%s172 + $0x68] sm:$0xff] %v996
      %1036 = vst [vmem:[%s172 + $0x70] sm:$0xff] %v1001
      %1037 = vst [vmem:[%s172 + $0x78] sm:$0xff] %v1004
      %1038 = vst [vmem:[%s172 + $0x80] sm:$0xff] %v1009
      %1039 = vst [vmem:[%s172 + $0x88] sm:$0xff] %v1012
      %1040 = vst [vmem:[%s172 + $0x90] sm:$0xff] %v1017
      %s1041 = smul.u32 19, %s14
      %p1042 = scmp.lt.s32.totalorder %s1041, 37
      %s1043 = scalar_select %p1042, %s1041, 37
      %s1044 = smul.addr %s1043, 8
      %s1045 = scalar_lea.vmem %s3, %s1044
      // Predicated region
      $region33: #{edge_encoder_forward.1} parent=31 // pred_check
        %p1046 = pneg %p100
      $region34: #{edge_encoder_forward.1} parent=31 // pred_check_branch
        %1048 = sbr.rel (%p1046) target = $region36
      $region35: #{edge_encoder_forward.1} parent=31 // pred_region
        %s1049 = smul.u32 19, %s14
      $region36: #{edge_encoder_forward.1} parent=31 // pred_fallthru
        _
    $region32: #{edge_encoder_forward.1} parent=5 // pred_fallthru
      _
    %p1050 = scmp.le.s32.totalorder 2, %s9
    // Predicated region
    $region37: #{edge_encoder_forward.1} parent=5 // pred_check
      %p1051 = pneg %p1050
    $region38: #{edge_encoder_forward.1} parent=5 // pred_check_branch
      %1053 = sbr.rel (%p1051) target = $region40
    $region39: #{edge_encoder_forward.1} parent=5 // pred_region
      %s1054 = ssub.s32 %s9, 2
      // Predicated region
      $region41: #{edge_encoder_forward.1} parent=39 // pred_check
        %p1055 = pneg %p106
      $region42: #{edge_encoder_forward.1} parent=39 // pred_check_branch
        %1057 = sbr.rel (%p1055) target = $region44
      $region43: #{edge_encoder_forward.1} parent=39 // pred_region
        %s1058 = smul.u32 19, %s15
        %p1059 = scmp.lt.s32.totalorder %s1058, 37
        %s1060 = scalar_select %p1059, %s1058, 37
        %s1061 = smul.addr %s1060, 8
        %s1062 = scalar_lea.vmem %s3, %s1061
      $region44: #{edge_encoder_forward.1} parent=39 // pred_fallthru
        _
    $region40: #{edge_encoder_forward.1} parent=5 // pred_fallthru
      _
  $region6: #{edge_encoder_forward.1} parent=0 // loop_footer
    %s13 = sadd.s32 1, %s9
  $region7: #{edge_encoder_forward.1} parent=0 // loop_footer_branch
    %8 = sbr.rel target = $region3
  $region8: #{edge_encoder_forward.1} parent=0 // loop_exit
    _

</llo_original>
